<compile_context>
chip_gen: v7x
topology: tpu7x:2x2x1
jax: 0.10.0
libtpu: 0.0.40
codegen_flags: <defaults>
</compile_context>

<pallas_src>
import jax
import jax.numpy as jnp
from jax.experimental import pallas as pl
from jax.experimental.pallas import tpu as pltpu


def _round_up(a, b):
    return ((a + b - 1) // b) * b


def _make_kernel(tb, din, dout, lane_dense):
    """Build the fused forward kernel for a (tb, din) activation tile."""
    packed_out_rows = (tb * dout) // 128 if lane_dense else None

    def kernel(x_ref, w1m_ref, w2t_ref, b2_ref, o_ref):
        x = x_ref[...]
        if lane_dense:
            # (tb*din//128, 128) row-major is byte-identical to (tb, din).
            x = x.reshape(tb, din)

        # --- masked linear (CustomizedLinear, bias=None) + ReLU, f32 accumulate ---
        h = jnp.maximum(
            jnp.dot(x, w1m_ref[...], preferred_element_type=jnp.float32), 0.0)

        # --- nn.Linear(H, Dout) + ReLU, kept entirely in f32 (W2 is tiny & resident) ---
        logits = jnp.maximum(
            jnp.dot(h, w2t_ref[...], preferred_element_type=jnp.float32)
            + b2_ref[...], 0.0)

        # --- softmax over dim=1 (last axis), exact normalization in f32 ---
        m = jnp.max(logits, axis=-1, keepdims=True)
        e = jnp.exp(logits - m)
        p = e / jnp.sum(e, axis=-1, keepdims=True)
        p = p.astype(o_ref.dtype)
        if lane_dense:
            # Pack 128/dout logical rows per physical 128-lane row before the
            # store -> unmasked vst instead of dout-lane masked partial stores.
            p = p.reshape(packed_out_rows, 128)
        o_ref[...] = p

    return kernel


def custom_simple_net(x, w1, mask, w2, b2, *,
                      block_b=32768, operand_dtype=None, out_dtype=jnp.float32):
    """Fused CustomSimpleNet forward.

    x: (B, Din); w1: (H, Din); mask: (Din, H); w2: (Dout, H); b2: (Dout,).
    operand_dtype: dtype for x / masked-W1 MXU operands (default: x.dtype).
                   Accumulation, second matmul, bias-add and softmax stay f32.
    out_dtype: dtype of the returned probabilities (f32 default, bf16 allowed).
    """
    B, Din = x.shape
    H = w1.shape[0]
    Dout = w2.shape[0]
    op_dtype = jnp.dtype(operand_dtype) if operand_dtype is not None else x.dtype

    # Fold the static connectivity mask into W1 once, outside the kernel:
    # x @ (W1 * mask^T)^T == x @ (W1^T * mask).
    w1m = (jnp.transpose(w1) * mask).astype(op_dtype)      # (Din, H)
    w2t = jnp.transpose(w2).astype(jnp.float32)            # (H, Dout), f32, VMEM-resident
    b2_2d = b2.reshape(1, Dout).astype(jnp.float32)
    if x.dtype != op_dtype:
        # NOTE: ideally x already arrives in op_dtype; this cast costs one
        # extra HBM round trip of x.
        x = x.astype(op_dtype)

    op_bytes = jnp.dtype(op_dtype).itemsize
    out_bytes = jnp.dtype(out_dtype).itemsize
    cost = pl.CostEstimate(
        flops=int(2 * B * (Din * H + H * Dout)),
        transcendentals=int(B * Dout),                      # exp per output element
        bytes_accessed=int(B * Din * op_bytes + B * Dout * out_bytes
                           + Din * H * op_bytes + H * Dout * 4 + Dout * 4),
    )

    # ---------------- small / launch-bound batches: single call, no grid -------------
    if B <= 256:
        kernel = _make_kernel(B, Din, Dout, lane_dense=False)
        return pl.pallas_call(
            kernel,
            out_shape=jax.ShapeDtypeStruct((B, Dout), out_dtype),
            in_specs=[pl.BlockSpec(memory_space=pltpu.MemorySpace.VMEM)] * 4,
            out_specs=pl.BlockSpec(memory_space=pltpu.MemorySpace.VMEM),
            cost_estimate=cost,
        )(x, w1m, w2t, b2_2d)

    # ---------------- batch-tiled path -----------------------------------------------
    # Big tiles amortize the ~0.35us/grid-step overhead; >= 2 steps so both v7x
    # TensorCores get work; clamp tile size so streams + intermediates fit VMEM
    # comfortably on v7x's 64 MiB.
    tb = max(128, min(block_b, _round_up(pl.cdiv(B, 2), 128)))
    row_bytes = (2 * (Din * op_bytes + Dout * out_bytes)          # double-buffered x/out
                 + (Din * op_bytes + H * 4 + 4 * Dout * 4))       # in-kernel intermediates
    vmem_budget = 40 * 1024 * 1024
    tb = min(tb, max(128, (vmem_budget // row_bytes) // 128 * 128))
    n_tiles = pl.cdiv(B, tb)

    cparams = pltpu.CompilerParams(
        dimension_semantics=("parallel",),            # batch tiles shard across TCs
        vmem_limit_bytes=56 * 1024 * 1024,            # headroom under v7x's 64 MiB
    )

    # Lane-dense I/O is legal when the global reshapes are exact and the packed
    # block's sublane dim stays a multiple of 8.
    lane_dense = ((B * Din) % 128 == 0 and (B * Dout) % 128 == 0 and
                  (tb * Din) % 1024 == 0 and (tb * Dout) % 1024 == 0)
    kernel = _make_kernel(tb, Din, Dout, lane_dense)

    if lane_dense:
        # Present x / y as (rows, 128) slabs: same row-major bytes, so the
        # wrapper reshapes are metadata-only, and every DMA is 128 lanes wide.
        x_lanes = x.reshape(B * Din // 128, 128)
        y = pl.pallas_call(
            kernel,
            out_shape=jax.ShapeDtypeStruct((B * Dout // 128, 128), out_dtype),
            grid_spec=pl.GridSpec(
                grid=(n_tiles,),
                in_specs=[
                    pl.BlockSpec((tb * Din // 128, 128), lambda i: (i, 0)),  # x streams
                    pl.BlockSpec((Din, H), lambda i: (0, 0)),                # weights resident
                    pl.BlockSpec((H, Dout), lambda i: (0, 0)),
                    pl.BlockSpec((1, Dout), lambda i: (0, 0)),
                ],
                out_specs=pl.BlockSpec((tb * Dout // 128, 128), lambda i: (i, 0)),
            ),
            compiler_params=cparams,
            cost_estimate=cost,
        )(x_lanes, w1m, w2t, b2_2d)
        return y.reshape(B, Dout)

    # Fallback: plain 2D tiles; the partial last block is masked by Pallas, so
    # there is still no wrapper-side pad or output slice (no extra HBM trips),
    # but I/O tiles are lane-sparse (Din / Dout of 128 lanes).
    return pl.pallas_call(
        kernel,
        out_shape=jax.ShapeDtypeStruct((B, Dout), out_dtype),
        grid_spec=pl.GridSpec(
            grid=(n_tiles,),
            in_specs=[
                pl.BlockSpec((tb, Din), lambda i: (i, 0)),
                pl.BlockSpec((Din, H), lambda i: (0, 0)),
                pl.BlockSpec((H, Dout), lambda i: (0, 0)),
                pl.BlockSpec((1, Dout), lambda i: (0, 0)),
            ],
            out_specs=pl.BlockSpec((tb, Dout), lambda i: (i, 0)),
        ),
        compiler_params=cparams,
        cost_estimate=cost,
    )(x, w1m, w2t, b2_2d)


def _reference(x, w1, mask, w2, b2):
    x = x.astype(jnp.float32)
    h = jnp.maximum(x @ (w1 * mask.T).T, 0.0)
    logits = jnp.maximum(h @ w2.T + b2, 0.0)
    return jax.nn.softmax(logits, axis=1)


if __name__ == "__main__":
    # Shapes consistent with the module: x is (B, Din); H hidden; Dout classes.
    Din, H, Dout = 16, 32, 8

    key = jax.random.PRNGKey(0)
    k_x, k_w1, k_mask, k_w2, k_b2, k_xl, k_xu = jax.random.split(key, 7)

    w1 = jax.random.normal(k_w1, (H, Din), dtype=jnp.float32) * 0.1        # CustomizedLinear weight
    mask = (jax.random.uniform(k_mask, (Din, H)) > 0.5).astype(jnp.float32)  # binary mask (Din, H)
    w2 = jax.random.normal(k_w2, (Dout, H), dtype=jnp.float32) * 0.1       # nn.Linear weight
    b2 = jax.random.normal(k_b2, (Dout,), dtype=jnp.float32) * 0.1         # nn.Linear bias

    # --- 1) small / launch-bound path (no grid), f32 ---
    x = jax.random.normal(k_x, (4, Din), dtype=jnp.float32)
    y = jax.block_until_ready(custom_simple_net(x, w1, mask, w2, b2))
    y_ref = _reference(x, w1, mask, w2, b2)
    assert y.shape == (4, Dout)
    assert jnp.allclose(y, y_ref, atol=1e-3, rtol=1e-3), "small-path mismatch vs reference"
    assert jnp.allclose(jnp.sum(y, axis=1), 1.0, atol=1e-3), "softmax rows must sum to 1"

    # --- 2) even large batch -> lane-dense batch-tiled path (2 parallel tiles) ---
    Bl = 4096
    xl = jax.random.normal(k_xl, (Bl, Din), dtype=jnp.float32)
    yl = jax.block_until_ready(custom_simple_net(xl, w1, mask, w2, b2))
    yl_ref = _reference(xl, w1, mask, w2, b2)
    assert yl.shape == (Bl, Dout)
    assert jnp.allclose(yl, yl_ref, atol=1e-3, rtol=1e-3), "lane-dense tiled path mismatch"
    assert jnp.allclose(jnp.sum(yl, axis=1), 1.0, atol=1e-3), "softmax rows must sum to 1"

    # --- 3) uneven batch -> partial last block handled by the grid (no pad/slice) ---
    Bu = 1000
    xu = jax.random.normal(k_xu, (Bu, Din), dtype=jnp.float32)
    yu = jax.block_until_ready(custom_simple_net(xu, w1, mask, w2, b2))
    yu_ref = _reference(xu, w1, mask, w2, b2)
    assert yu.shape == (Bu, Dout)
    assert jnp.allclose(yu, yu_ref, atol=1e-3, rtol=1e-3), "partial-block path mismatch"

    # --- 4) bf16 operands + bf16 output probabilities (bandwidth-cutting option) ---
    xb = xl.astype(jnp.bfloat16)
    yb = jax.block_until_ready(
        custom_simple_net(xb, w1, mask, w2, b2, out_dtype=jnp.bfloat16))
    assert yb.dtype == jnp.bfloat16 and yb.shape == (Bl, Dout)
    assert jnp.allclose(yb.astype(jnp.float32), yl_ref, atol=2e-2, rtol=2e-2), \
        "bf16 path mismatch vs reference"

    # TODO(synk): optional fp8_e4m3 x-operand path for v7x's fp8 MXU was not added
    # (needs accuracy validation and is not native on v5e/v6e).
    print("KERNEL_OK")
</pallas_src>

<mosaic_0001>
module attributes {stable_mosaic.version = 11 : i64} {
  func.func @kernel(%arg0: memref<4x16xf32, #tpu.memory_space<vmem>>, %arg1: memref<16x32xf32, #tpu.memory_space<vmem>>, %arg2: memref<32x8xf32, #tpu.memory_space<vmem>>, %arg3: memref<1x8xf32, #tpu.memory_space<vmem>>, %arg4: memref<4x8xf32, #tpu.memory_space<vmem>>) attributes {dimension_semantics = [], scalar_prefetch = 0 : i64, scratch_operands = 0 : i64, tpu.core_type = #tpu.core_type<tc>} {
    %c0 = arith.constant 0 : index
    %c0_0 = arith.constant 0 : index
    %0 = vector.load %arg0[%c0, %c0_0] : memref<4x16xf32, #tpu.memory_space<vmem>>, vector<4x16xf32>
    %c0_1 = arith.constant 0 : index
    %c0_2 = arith.constant 0 : index
    %1 = vector.load %arg1[%c0_1, %c0_2] : memref<16x32xf32, #tpu.memory_space<vmem>>, vector<16x32xf32>
    %cst = arith.constant dense<0.000000e+00> : vector<4x32xf32>
    %2 = tpu.matmul %0, %1, %cst {dimension_numbers = #tpu.dot_dimension_numbers<[1], [0], [0], [1], [0, 0, 1, 1], [], []>} : vector<4x16xf32>, vector<16x32xf32>, vector<4x32xf32> -> vector<4x32xf32>
    %cst_3 = arith.constant 0.000000e+00 : f32
    %3 = vector.broadcast %cst_3 : f32 to vector<4x32xf32>
    %4 = arith.maximumf %2, %3 : vector<4x32xf32>
    %c0_4 = arith.constant 0 : index
    %c0_5 = arith.constant 0 : index
    %5 = vector.load %arg2[%c0_4, %c0_5] : memref<32x8xf32, #tpu.memory_space<vmem>>, vector<32x8xf32>
    %cst_6 = arith.constant dense<0.000000e+00> : vector<4x8xf32>
    %6 = tpu.matmul %4, %5, %cst_6 {dimension_numbers = #tpu.dot_dimension_numbers<[1], [0], [0], [1], [0, 0, 1, 1], [], []>} : vector<4x32xf32>, vector<32x8xf32>, vector<4x8xf32> -> vector<4x8xf32>
    %c0_7 = arith.constant 0 : index
    %c0_8 = arith.constant 0 : index
    %7 = vector.load %arg3[%c0_7, %c0_8] : memref<1x8xf32, #tpu.memory_space<vmem>>, vector<1x8xf32>
    %8 = vector.broadcast %7 : vector<1x8xf32> to vector<4x8xf32>
    %9 = arith.addf %6, %8 : vector<4x8xf32>
    %cst_9 = arith.constant 0.000000e+00 : f32
    %10 = vector.broadcast %cst_9 : f32 to vector<4x8xf32>
    %11 = arith.maximumf %9, %10 : vector<4x8xf32>
    %cst_10 = arith.constant dense<0xFF800000> : vector<4xf32>
    %12 = vector.multi_reduction <maximumf>, %11, %cst_10 [1] : vector<4x8xf32> to vector<4xf32>
    %13 = vector.shape_cast %12 : vector<4xf32> to vector<4x1xf32>
    %14 = vector.broadcast %13 : vector<4x1xf32> to vector<4x8xf32>
    %15 = arith.subf %11, %14 : vector<4x8xf32>
    %16 = math.exp %15 : vector<4x8xf32>
    %cst_11 = arith.constant dense<0.000000e+00> : vector<4xf32>
    %17 = vector.multi_reduction <add>, %16, %cst_11 [1] : vector<4x8xf32> to vector<4xf32>
    %18 = vector.shape_cast %17 : vector<4xf32> to vector<4x1xf32>
    %19 = vector.broadcast %18 : vector<4x1xf32> to vector<4x8xf32>
    %20 = arith.divf %16, %19 : vector<4x8xf32>
    %c0_12 = arith.constant 0 : index
    %c0_13 = arith.constant 0 : index
    %21 = vector.load %arg4[%c0_12, %c0_13] : memref<4x8xf32, #tpu.memory_space<vmem>>, vector<4x8xf32>
    tpu.vector_store %arg4[%c0_12, %c0_13], %20 {strides = array<i32>} : memref<4x8xf32, #tpu.memory_space<vmem>>, vector<4x8xf32>,
    return
  }
}

</mosaic_0001>

<llo_original>
// kernel: tpu_custom_call.1
$region0: #{tpu_custom_call.1}
  #allocation0 [shape = 'u32[]', space=smem, size = 0x4, offset = 0x4, fixed_abs, tag = 'smem constant byte address 0x4 - core index']
  #allocation1 [shape = 'u32[144,128]{1,0:T(1,128)}', space=vmem, size = 0x12000, scoped, tag = 'internal scratch']
  %s0 = inlined_call_operand.vmem [shape: f32[4,16], index: 0, kind: input, shape index: {}]
  %s1 = inlined_call_operand.vmem [shape: f32[16,32], index: 1, kind: input, shape index: {}]
  %s2 = inlined_call_operand.vmem [shape: f32[32,8], index: 2, kind: input, shape index: {}]
  %s3 = inlined_call_operand.vmem [shape: f32[1,8], index: 3, kind: input, shape index: {}]
  %s4 = inlined_call_operand.hbm [shape: f32[4,8], index: 4, kind: output, shape index: {}]
  %s5 = sld [smem:[#allocation0]]
  $region26: #{tpu_custom_call.1} parent=0
    _
  %s7 = ssub.s32 1, %s5
  %s8 = scalar_select 0, %s7, %s5
  $region1: #{tpu_custom_call.1} parent=0
    #allocation2 [shape = 'u8[2048]{0}', space=vmem, size = 0x800, scoped, tag = 'output window, operand 0, single buffered']
    #allocation3 [shape = 's32[1]{0}', space=sflag, size = 0x4, scoped, tag = 'scoped memory for tpu_custom_call.1']
    %9 = vsyncpa [#allocation3], 0
    // Predicated region
    $region2: #{tpu_custom_call.1} parent=1 // pred_check
      _
    $region3: #{tpu_custom_call.1} parent=1 // pred_check_branch
      %11 = sbr.rel (0) target = $region5
    $region4: #{tpu_custom_call.1} parent=1 // pred_region
      _
    $region5: #{tpu_custom_call.1} parent=1 // pred_fallthru
      _
    // Predicated region
    $region6: #{tpu_custom_call.1} parent=1 // pred_check
      _
    $region7: #{tpu_custom_call.1} parent=1 // pred_check_branch
      %13 = sbr.rel (0) target = $region9
    $region8: #{tpu_custom_call.1} parent=1 // pred_region
      _
    $region9: #{tpu_custom_call.1} parent=1 // pred_fallthru
      _
    // Predicated region
    $region10: #{tpu_custom_call.1} parent=1 // pred_check
      _
    $region11: #{tpu_custom_call.1} parent=1 // pred_check_branch
      %15 = sbr.rel (0) target = $region13
    $region12: #{tpu_custom_call.1} parent=1 // pred_region
      _
    $region13: #{tpu_custom_call.1} parent=1 // pred_fallthru
      _
    // Predicated region
    $region14: #{tpu_custom_call.1} parent=1 // pred_check
      _
    $region15: #{tpu_custom_call.1} parent=1 // pred_check_branch
      %17 = sbr.rel (0) target = $region17
    $region16: #{tpu_custom_call.1} parent=1 // pred_region
      _
    $region17: #{tpu_custom_call.1} parent=1 // pred_fallthru
      _
    %v18 = vld [vmem:[%s0] sm:$0xf]
    %v19 = vld [vmem:[%s1] sm:$0xff]
    %v20 = vld [vmem:[%s1 + $0x8] sm:$0xff]
    %vm21 = vcmask 130048
    %v23 = vsel %vm21, %v18, 0
    %25 = vmatprep.subr.mxu0 0.0
    %26 = vmatpush1.msra.mxu0 %v19
    %27 = vmatprep.subr.mxu0 0.0
    %28 = vmatpush1.msra.mxu0 %v20
    %29 = vmatprep.subr.mxu0 0.0
    %30 = vmatpush1.msra.mxu0 0.0
    %31 = vmatprep.subr.mxu0 0.0
    %32 = vmatpush1.msra.mxu0 0.0
    %33 = vmatprep.subr.mxu0 0.0
    %34 = vmatpush1.msra.mxu0 0.0
    %35 = vmatprep.subr.mxu0 0.0
    %36 = vmatpush1.msra.mxu0 0.0
    %37 = vmatprep.subr.mxu0 0.0
    %38 = vmatpush1.msra.mxu0 0.0
    %39 = vmatprep.subr.mxu0 0.0
    %40 = vmatpush1.msra.mxu0 0.0
    %41 = vmatprep.subr.mxu0 0.0
    %42 = vmatpush1.msra.mxu0 0.0
    %43 = vmatprep.subr.mxu0 0.0
    %44 = vmatpush1.msra.mxu0 0.0
    %45 = vmatprep.subr.mxu0 0.0
    %46 = vmatpush1.msra.mxu0 0.0
    %47 = vmatprep.subr.mxu0 0.0
    %48 = vmatpush1.msra.mxu0 0.0
    %49 = vmatprep.subr.mxu0 0.0
    %50 = vmatpush1.msra.mxu0 0.0
    %51 = vmatprep.subr.mxu0 0.0
    %52 = vmatpush1.msra.mxu0 0.0
    %53 = vmatprep.subr.mxu0 0.0
    %54 = vmatpush1.msra.mxu0 0.0
    %55 = vmatprep.subr.mxu0 0.0
    %56 = vmatpush1.msra.mxu0 0.0
    %57 = vmatprep.subr.mxu0 0.0
    %58 = vmatpush1.msra.mxu0 0.0
    %59 = vmatprep.subr.mxu0 0.0
    %60 = vmatpush1.msra.mxu0 0.0
    %61 = vmatprep.subr.mxu0 0.0
    %62 = vmatpush1.msra.mxu0 0.0
    %63 = vmatprep.subr.mxu0 0.0
    %64 = vmatpush1.msra.mxu0 0.0
    %65 = vmatprep.subr.mxu0 0.0
    %66 = vmatpush1.msra.mxu0 0.0
    %67 = vmatprep.subr.mxu0 0.0
    %68 = vmatpush1.msra.mxu0 0.0
    %69 = vmatprep.subr.mxu0 0.0
    %70 = vmatpush1.msra.mxu0 0.0
    %71 = vmatprep.subr.mxu0 0.0
    %72 = vmatpush1.msra.mxu0 0.0
    %73 = vmatprep.subr.mxu0 0.0
    %74 = vmatpush1.msra.mxu0 0.0
    %75 = vmatprep.subr.mxu0 0.0
    %76 = vmatpush1.msra.mxu0 0.0
    %77 = vmatprep.subr.mxu0 0.0
    %78 = vmatpush1.msra.mxu0 0.0
    %79 = vmatprep.subr.mxu0 0.0
    %80 = vmatpush1.msra.mxu0 0.0
    %81 = vmatprep.subr.mxu0 0.0
    %82 = vmatpush1.msra.mxu0 0.0
    %83 = vmatprep.subr.mxu0 0.0
    %84 = vmatpush1.msra.mxu0 0.0
    %85 = vmatprep.subr.mxu0 0.0
    %86 = vmatpush1.msra.mxu0 0.0
    %87 = vmatprep.subr.mxu0 0.0
    %88 = vmatpush1.msra.mxu0 0.0
    %89 = vmatprep.mubr.f32.mxu0 0.0
    %90 = vmatmul.mubr.f32.gmra.mrb[0].mxu0 %v23
    %v91 = vpop.f32.mrb[0].mxu0
    %v92 = vadd.f32 0.0, %v91
    %v93 = vpop.f32.mrb[0].mxu0
    %94 = vdwg.mxu0
    %v95 = vmax.f32 %v92, 0.0
    %v96 = vld [vmem:[%s2] sm:$0xff]
    %v97 = vld [vmem:[%s2 + $0x8] sm:$0xff]
    %v98 = vld [vmem:[%s2 + $0x10] sm:$0xff]
    %v99 = vld [vmem:[%s2 + $0x18] sm:$0xff]
    %v100 = vld [vmem:[%s3] sm:$0x1]
    %v102 = vlaneseq
    %v103 = vshrl.u32 %v102, 7
    %v104 = vsub.s32 0, %v103
    %v105 = vrot.slane %v100, %v104
    %vm107 = vcmask 261120
    %v109 = vsel %vm107, %v95, 0
    %111 = vmatprep.subr.mxu0 0.0
    %112 = vmatpush1.msra.mxu0 %v96
    %113 = vmatprep.subr.mxu0 0.0
    %114 = vmatpush1.msra.mxu0 %v97
    %115 = vmatprep.subr.mxu0 0.0
    %116 = vmatpush1.msra.mxu0 %v98
    %117 = vmatprep.subr.mxu0 0.0
    %118 = vmatpush1.msra.mxu0 %v99
    %119 = vmatprep.subr.mxu0 0.0
    %120 = vmatpush1.msra.mxu0 0.0
    %121 = vmatprep.subr.mxu0 0.0
    %122 = vmatpush1.msra.mxu0 0.0
    %123 = vmatprep.subr.mxu0 0.0
    %124 = vmatpush1.msra.mxu0 0.0
    %125 = vmatprep.subr.mxu0 0.0
    %126 = vmatpush1.msra.mxu0 0.0
    %127 = vmatprep.subr.mxu0 0.0
    %128 = vmatpush1.msra.mxu0 0.0
    %129 = vmatprep.subr.mxu0 0.0
    %130 = vmatpush1.msra.mxu0 0.0
    %131 = vmatprep.subr.mxu0 0.0
    %132 = vmatpush1.msra.mxu0 0.0
    %133 = vmatprep.subr.mxu0 0.0
    %134 = vmatpush1.msra.mxu0 0.0
    %135 = vmatprep.subr.mxu0 0.0
    %136 = vmatpush1.msra.mxu0 0.0
    %137 = vmatprep.subr.mxu0 0.0
    %138 = vmatpush1.msra.mxu0 0.0
    %139 = vmatprep.subr.mxu0 0.0
    %140 = vmatpush1.msra.mxu0 0.0
    %141 = vmatprep.subr.mxu0 0.0
    %142 = vmatpush1.msra.mxu0 0.0
    %143 = vmatprep.subr.mxu0 0.0
    %144 = vmatpush1.msra.mxu0 0.0
    %145 = vmatprep.subr.mxu0 0.0
    %146 = vmatpush1.msra.mxu0 0.0
    %147 = vmatprep.subr.mxu0 0.0
    %148 = vmatpush1.msra.mxu0 0.0
    %149 = vmatprep.subr.mxu0 0.0
    %150 = vmatpush1.msra.mxu0 0.0
    %151 = vmatprep.subr.mxu0 0.0
    %152 = vmatpush1.msra.mxu0 0.0
    %153 = vmatprep.subr.mxu0 0.0
    %154 = vmatpush1.msra.mxu0 0.0
    %155 = vmatprep.subr.mxu0 0.0
    %156 = vmatpush1.msra.mxu0 0.0
    %157 = vmatprep.subr.mxu0 0.0
    %158 = vmatpush1.msra.mxu0 0.0
    %159 = vmatprep.subr.mxu0 0.0
    %160 = vmatpush1.msra.mxu0 0.0
    %161 = vmatprep.subr.mxu0 0.0
    %162 = vmatpush1.msra.mxu0 0.0
    %163 = vmatprep.subr.mxu0 0.0
    %164 = vmatpush1.msra.mxu0 0.0
    %165 = vmatprep.subr.mxu0 0.0
    %166 = vmatpush1.msra.mxu0 0.0
    %167 = vmatprep.subr.mxu0 0.0
    %168 = vmatpush1.msra.mxu0 0.0
    %169 = vmatprep.subr.mxu0 0.0
    %170 = vmatpush1.msra.mxu0 0.0
    %171 = vmatprep.subr.mxu0 0.0
    %172 = vmatpush1.msra.mxu0 0.0
    %173 = vmatprep.subr.mxu0 0.0
    %174 = vmatpush1.msra.mxu0 0.0
    %175 = vmatprep.mubr.f32.mxu0 0.0
    %176 = vmatmul.mubr.f32.gmra.mrb[0].mxu0 %v109
    %v177 = vpop.f32.mrb[0].mxu0
    %v178 = vadd.f32 %v105, %v177
    %v179 = vpop.f32.mrb[0].mxu0
    %180 = vdwg.mxu0
    %v181 = vmax.f32 %v178, 0.0
    %vm182 = vcmask 60416
    %v183 = vsel %vm182, %v181, -inf
    %184 = vmax.xlane.f32.xlu0 %v183
    %v185 = vpop.xlane.xlu0 %184
    %v186 = vsub.f32 %v181, %v185
    %v187 = vmul.f32 %v186, 1.442695
    %v188 = vpow.pop %v187
    %v189 = vsel %vm182, %v188, 0.0
    %190 = vadd.xlane.f32.xlu0 %v189
    %v191 = vpop.xlane.xlu0 %190
    %v192 = vrcp.pop %v191
    %v193 = vmul.f32 %v188, %v192
    %194 = vst.msk [vmem:[#allocation2] sm:$0xf] %vm182, %v193
    // Predicated region
    $region18: #{tpu_custom_call.1} parent=1 // pred_check
      _
    $region19: #{tpu_custom_call.1} parent=1 // pred_check_branch
      %196 = sbr.rel (0) target = $region21
    $region20: #{tpu_custom_call.1} parent=1 // pred_region
      %s198 = ssub.s32 64, 64
      %199 = vsyncadd [#allocation3], %s198
      %s201 = sshll.u32 [#allocation2], 4
      %s202 = int_to_ptr.vmem [resolvable:$true] %s201
      %204 = dma.vmem_to_hbm [thread:$0]  %s202, 64, %s4, [#allocation3]
    $region21: #{tpu_custom_call.1} parent=1 // pred_fallthru
      _
    // Predicated region
    $region22: #{tpu_custom_call.1} parent=1 // pred_check
      _
    $region23: #{tpu_custom_call.1} parent=1 // pred_check_branch
      %206 = sbr.rel (0) target = $region25
    $region24: #{tpu_custom_call.1} parent=1 // pred_region
      %207 = dma.done [#allocation3], 64
    $region25: #{tpu_custom_call.1} parent=1 // pred_fallthru
      _
    %208 = vsyncpa [#allocation3], 1

</llo_original>
